<compile_context>
chip_gen: v7x
topology: tpu7x:2x2x1
jax: 0.10.0
libtpu: 0.0.40
codegen_flags: <defaults>
</compile_context>

<pallas_src>
import jax
import jax.numpy as jnp
from jax.experimental import pallas as pl
from jax.experimental.pallas import tpu as pltpu


def _linear_kernel(x_ref, w_ref, b_ref, o_ref):
    # x_ref: (TB, D) VMEM   — streamed batch tile
    # w_ref: (1, D)  VMEM   — resident, lane-dense weight row
    # b_ref: (1, 1)  SMEM   — scalar bias
    # o_ref: (TB, 1) VMEM
    # VPU elementwise multiply + XLU lane reduce; avoids the degenerate
    # lane-width-1 MXU matmul and its layout churn. Output store traffic is
    # only 1/D of input traffic, so the width-1 masked store is acceptable.
    b = b_ref[0, 0]
    acc = jnp.sum(x_ref[...] * w_ref[...], axis=-1, keepdims=True)
    o_ref[...] = (acc + b).astype(o_ref.dtype)


def _pick_batch_tile(B, D, itemsize, target_tile_bytes=4 << 20):
    """Largest batch tile (multiple of 8, <=1024) whose x slab fits the target.

    4 MiB per tile -> 8 MiB double-buffered x, comfortably under the scoped
    VMEM defaults on v5e (16 MiB), v6e (32 MiB) and v7x (32 MiB).
    """
    if B <= 8:
        return B  # full-array block; no (8,128) constraint issue
    tb = target_tile_bytes // max(1, D * itemsize)
    tb = max(8, min(tb, 1024, B))
    return (tb // 8) * 8


def linear_regression_forward(x, weight, bias, *, batch_tile=None):
    """y = x @ weight.T + bias  (PyTorch nn.Linear(input_size, 1) forward).

    x:      [B, D] float32
    weight: [1, D] float32  (PyTorch nn.Linear weight layout)
    bias:   [1]    float32  (PyTorch nn.Linear bias layout) or [1, 1]
    returns [B, 1] float32
    """
    B, D = x.shape
    weight = weight.reshape(1, D)
    bias = bias.reshape(1, 1)

    tb = batch_tile if batch_tile is not None else _pick_batch_tile(
        B, D, x.dtype.itemsize)

    # Pad the batch so every grid step sees a full (tb, D) block.
    b_pad = pl.cdiv(B, tb) * tb
    x_in = x if b_pad == B else jnp.zeros((b_pad, D), x.dtype).at[:B].set(x)

    out = pl.pallas_call(
        _linear_kernel,
        out_shape=jax.ShapeDtypeStruct((b_pad, 1), x.dtype),
        grid_spec=pltpu.PrefetchScalarGridSpec(
            num_scalar_prefetch=0,
            grid=(b_pad // tb,),
            in_specs=[
                pl.BlockSpec((tb, D), lambda i: (i, 0)),   # streamed x tiles
                pl.BlockSpec((1, D), lambda i: (0, 0)),    # resident weight
                pl.BlockSpec(memory_space=pltpu.MemorySpace.SMEM),  # scalar bias
            ],
            out_specs=pl.BlockSpec((tb, 1), lambda i: (i, 0)),
        ),
        compiler_params=pltpu.CompilerParams(
            dimension_semantics=("parallel",),  # megacore sharding on v7x
        ),
    )(x_in, weight, bias)

    return out if b_pad == B else out[:B]


if __name__ == "__main__":
    # Small shapes implied by the module: batch=8, input_size=32.
    batch, input_size = 8, 32

    key = jax.random.PRNGKey(0)
    kx, kw, kb = jax.random.split(key, 3)

    x = jax.random.normal(kx, (batch, input_size), dtype=jnp.float32)

    # PyTorch nn.Linear default init: uniform(-1/sqrt(in), 1/sqrt(in)),
    # weight in PyTorch layout [1, input_size], bias [1].
    bound = 1.0 / (input_size ** 0.5)
    weight = jax.random.uniform(
        kw, (1, input_size), minval=-bound, maxval=bound, dtype=jnp.float32)
    bias = jax.random.uniform(
        kb, (1,), minval=-bound, maxval=bound, dtype=jnp.float32)

    y = linear_regression_forward(x, weight, bias)
    y = jax.block_until_ready(y)

    # Reference check in plain JAX (exactly PyTorch's x @ W.T + b).
    y_ref = x @ weight.T + bias
    assert y.shape == (batch, 1)
    assert jnp.allclose(y, y_ref, atol=1e-5, rtol=1e-5)

    print("KERNEL_OK")
</pallas_src>

<mosaic_0001>
module attributes {stable_mosaic.version = 11 : i64} {
  func.func @_linear_kernel(%arg0: i32, %arg1: memref<8x32xf32, #tpu.memory_space<vmem>>, %arg2: memref<1x32xf32, #tpu.memory_space<vmem>>, %arg3: memref<1x1xf32, #tpu.memory_space<smem>>, %arg4: memref<8x1xf32, #tpu.memory_space<vmem>>) attributes {dimension_semantics = [#tpu.dimension_semantics<parallel>], iteration_bounds = array<i64: 1>, scalar_prefetch = 0 : i64, scratch_operands = 0 : i64, tpu.core_type = #tpu.core_type<tc>, window_params = [{transform_indices = @transform_0, window_bounds = array<i64: 8, 32>}, {pipeline_mode = #tpu.pipeline_mode<synchronous>, transform_indices = @transform_1, window_bounds = array<i64: 1, 32>}, {transform_indices = @transform_2, window_bounds = array<i64: 1, 1>}, {transform_indices = @transform_3, window_bounds = array<i64: 8, 1>}]} {
    %c0 = arith.constant 0 : index
    %c0_0 = arith.constant 0 : index
    %0 = memref.load %arg3[%c0, %c0_0] : memref<1x1xf32, #tpu.memory_space<smem>>
    %c0_1 = arith.constant 0 : index
    %c0_2 = arith.constant 0 : index
    %1 = vector.load %arg1[%c0_1, %c0_2] : memref<8x32xf32, #tpu.memory_space<vmem>>, vector<8x32xf32>
    %c0_3 = arith.constant 0 : index
    %c0_4 = arith.constant 0 : index
    %2 = vector.load %arg2[%c0_3, %c0_4] : memref<1x32xf32, #tpu.memory_space<vmem>>, vector<1x32xf32>
    %3 = vector.broadcast %2 : vector<1x32xf32> to vector<8x32xf32>
    %4 = arith.mulf %1, %3 : vector<8x32xf32>
    %cst = arith.constant dense<0.000000e+00> : vector<8xf32>
    %5 = vector.multi_reduction <add>, %4, %cst [1] : vector<8x32xf32> to vector<8xf32>
    %6 = vector.shape_cast %5 : vector<8xf32> to vector<8x1xf32>
    %7 = vector.broadcast %0 : f32 to vector<8x1xf32>
    %8 = arith.addf %6, %7 : vector<8x1xf32>
    %c0_5 = arith.constant 0 : index
    %c0_6 = arith.constant 0 : index
    %9 = vector.load %arg4[%c0_5, %c0_6] : memref<8x1xf32, #tpu.memory_space<vmem>>, vector<8x1xf32>
    tpu.vector_store %arg4[%c0_5, %c0_6], %8 {strides = array<i32>} : memref<8x1xf32, #tpu.memory_space<vmem>>, vector<8x1xf32>,
    return
  }
  func.func @transform_0(%arg0: i32) -> (i32, i32) {
    %c0_i32 = arith.constant 0 : i32
    %c0_i32_0 = arith.constant 0 : i32
    return %arg0, %c0_i32 : i32, i32
  }
  func.func @transform_1(%arg0: i32) -> (i32, i32) {
    %c0_i32 = arith.constant 0 : i32
    %c0_i32_0 = arith.constant 0 : i32
    %c0_i32_1 = arith.constant 0 : i32
    return %c0_i32, %c0_i32_0 : i32, i32
  }
  func.func @transform_2(%arg0: i32) -> (i32, i32) {
    %c0_i32 = arith.constant 0 : i32
    %c0_i32_0 = arith.constant 0 : i32
    %c0_i32_1 = arith.constant 0 : i32
    return %c0_i32, %c0_i32_0 : i32, i32
  }
  func.func @transform_3(%arg0: i32) -> (i32, i32) {
    %c0_i32 = arith.constant 0 : i32
    %c0_i32_0 = arith.constant 0 : i32
    return %arg0, %c0_i32 : i32, i32
  }
}

</mosaic_0001>

<llo_original>
// kernel: tpu_custom_call.1
$region0: #{tpu_custom_call.1}
  #allocation0 [shape = 'u32[]', space=smem, size = 0x4, offset = 0x4, fixed_abs, tag = 'smem constant byte address 0x4 - core index']
  #allocation1 [shape = 'u32[144,128]{1,0:T(1,128)}', space=vmem, size = 0x12000, scoped, tag = 'internal scratch']
  #allocation2 [shape = 'f32[1,1]{1,0:T(1,128)S(6)}', space=smem, size = 0x200, scoped, tag = 'scoped memory for tpu_custom_call.1']
  %s0 = inlined_call_operand.hbm [shape: f32[8,32], index: 0, kind: input, shape index: {}]
  %s1 = inlined_call_operand.vmem [shape: f32[1,32], index: 1, kind: input, shape index: {}]
  %s2 = inlined_call_operand.<no memory space> [shape: f32[1,1], index: 2, kind: input, shape index: {}]
  %s3 = inlined_call_operand.vmem [shape: f32[8,1], index: 3, kind: output, shape index: {}]
  %s4 = sld [smem:[#allocation0]]
  $region26: #{tpu_custom_call.1} parent=0
    _
  %s6 = ssub.s32 1, %s4
  %s7 = scalar_select 0, %s6, %s4
  %8 = sst [smem:[#allocation2]] %s2
  $region1: #{tpu_custom_call.1} parent=0
    #allocation3 [shape = 'u8[4096]{0}', space=vmem, size = 0x1000, scoped, tag = 'input window, operand 0, single buffered']
    #allocation4 [shape = 's32[1]{0}', space=sflag, size = 0x4, scoped, tag = 'scoped memory for tpu_custom_call.1']
    %9 = vsyncpa [#allocation4], 0
    // Predicated region
    $region2: #{tpu_custom_call.1} parent=1 // pred_check
      _
    $region3: #{tpu_custom_call.1} parent=1 // pred_check_branch
      %11 = sbr.rel (0) target = $region5
    $region4: #{tpu_custom_call.1} parent=1 // pred_region
      %s13 = ssub.s32 128, 128
      %14 = vsyncadd [#allocation4], %s13
      %s16 = sshll.u32 [#allocation3], 4
      %s17 = int_to_ptr.vmem [resolvable:$true] %s16
      %19 = dma.hbm_to_vmem [thread:$0]  %s0, 128, %s17, [#allocation4]
    $region5: #{tpu_custom_call.1} parent=1 // pred_fallthru
      _
    // Predicated region
    $region6: #{tpu_custom_call.1} parent=1 // pred_check
      _
    $region7: #{tpu_custom_call.1} parent=1 // pred_check_branch
      %21 = sbr.rel (0) target = $region9
    $region8: #{tpu_custom_call.1} parent=1 // pred_region
      _
    $region9: #{tpu_custom_call.1} parent=1 // pred_fallthru
      _
    // Predicated region
    $region10: #{tpu_custom_call.1} parent=1 // pred_check
      _
    $region11: #{tpu_custom_call.1} parent=1 // pred_check_branch
      %23 = sbr.rel (0) target = $region13
    $region12: #{tpu_custom_call.1} parent=1 // pred_region
      _
    $region13: #{tpu_custom_call.1} parent=1 // pred_fallthru
      _
    // Predicated region
    $region14: #{tpu_custom_call.1} parent=1 // pred_check
      _
    $region15: #{tpu_custom_call.1} parent=1 // pred_check_branch
      %25 = sbr.rel (0) target = $region17
    $region16: #{tpu_custom_call.1} parent=1 // pred_region
      %26 = dma.done [#allocation4], 128
    $region17: #{tpu_custom_call.1} parent=1 // pred_fallthru
      _
    %s27 = sld [smem:[#allocation2]]
    %v28 = vld [vmem:[#allocation3] sm:$0xff]
    %v29 = vld [vmem:[%s1] sm:$0x1]
    %v31 = vlaneseq
    %v32 = vshrl.u32 %v31, 7
    %v33 = vsub.s32 0, %v32
    %v34 = vrot.slane %v29, %v33
    %v36 = vmul.f32 %v28, %v34
    %vm37 = vcmask 261120
    %v38 = vsel %vm37, %v36, 0.0
    %39 = vadd.xlane.f32.xlu0 %v38
    %v40 = vpop.xlane.xlu0 %39
    %v41 = vstv %s27
    %v42 = vadd.f32 %v40, %v41
    %vm43 = vcmask 7168
    %44 = vst.msk [vmem:[%s3] sm:$0xff] %vm43, %v42
    // Predicated region
    $region18: #{tpu_custom_call.1} parent=1 // pred_check
      _
    $region19: #{tpu_custom_call.1} parent=1 // pred_check_branch
      %46 = sbr.rel (0) target = $region21
    $region20: #{tpu_custom_call.1} parent=1 // pred_region
      _
    $region21: #{tpu_custom_call.1} parent=1 // pred_fallthru
      _
    // Predicated region
    $region22: #{tpu_custom_call.1} parent=1 // pred_check
      _
    $region23: #{tpu_custom_call.1} parent=1 // pred_check_branch
      %48 = sbr.rel (0) target = $region25
    $region24: #{tpu_custom_call.1} parent=1 // pred_region
      _
    $region25: #{tpu_custom_call.1} parent=1 // pred_fallthru
      _
    %49 = vsyncpa [#allocation4], 1

</llo_original>
